<compile_context>
chip_gen: v6e
topology: v6e:2x2x1
jax: 0.10.0
libtpu: 0.0.40
codegen_flags: <defaults>
</compile_context>

<pallas_src>
import functools
import math

import jax
import jax.numpy as jnp
from jax.experimental import pallas as pl
from jax.experimental.pallas import tpu as pltpu


def gvp_kernel(s_ref, v_ref, wh_ref, wmu_ref, wms_ref, wmh_ref, bm_ref,
               s_out_ref, v_out_ref, *, h, mu, eps):
    # s_ref:   (n,   TB)   scalars, B on lanes
    # v_ref:   (3v,  TB)   vectors, row index = c*v + vi  (c = xyz)
    # wh_ref:  (3h,  3v)   kron(I3, W_h)   (block-diagonal, xyz-preserving)
    # wmu_ref: (3mu, 3h)   kron(I3, W_mu)
    # wms_ref: (m,   n)    W_m[:, :n]  (scalar half)
    # wmh_ref: (m,   h)    W_m[:, n:]  (vector-norm half)
    # bm_ref:  (m,   1)    bias
    s = s_ref[...].astype(jnp.float32)                                   # (n, TB)
    V = v_ref[...].astype(jnp.float32)                                   # (3v, TB)

    # Single 2-D MXU matmuls (xyz folded into the block-diagonal weights).
    Vh = jnp.dot(wh_ref[...], V, preferred_element_type=jnp.float32)    # (3h, TB)
    Vmu = jnp.dot(wmu_ref[...], Vh, preferred_element_type=jnp.float32) # (3mu,TB)

    # ||V_h|| over xyz: three full-width VPU mul-adds over sublane chunks.
    sh_sq = (Vh[0:h] * Vh[0:h]
             + Vh[h:2 * h] * Vh[h:2 * h]
             + Vh[2 * h:3 * h] * Vh[2 * h:3 * h])                        # (h, TB)
    # NOTE: matches the reference module exactly: clip(norm, min=eps)
    # (i.e. max(sqrt(sumsq), eps)), not sqrt(clamp(sumsq, eps)).
    s_h = jnp.maximum(jnp.sqrt(sh_sq), eps)                              # (h, TB)

    # s' = relu(W_m [s, s_h] + b); concat expressed as two matmuls.
    s_m = (jnp.dot(wms_ref[...], s, preferred_element_type=jnp.float32)
           + jnp.dot(wmh_ref[...], s_h, preferred_element_type=jnp.float32)
           + bm_ref[...])                                                # (m, TB)
    s_out_ref[...] = jnp.maximum(s_m, 0.0).astype(s_out_ref.dtype)

    # V' = sigmoid(clip(||V_mu||, eps)) * V_mu   (vector_gate=False path).
    vmu_sq = (Vmu[0:mu] * Vmu[0:mu]
              + Vmu[mu:2 * mu] * Vmu[mu:2 * mu]
              + Vmu[2 * mu:3 * mu] * Vmu[2 * mu:3 * mu])                 # (mu, TB)
    gate = jax.nn.sigmoid(jnp.maximum(jnp.sqrt(vmu_sq), eps))            # (mu, TB)
    Vd = Vmu * jnp.concatenate([gate, gate, gate], axis=0)               # (3mu,TB)
    v_out_ref[...] = Vd.astype(v_out_ref.dtype)


def gvp_forward_t(s_t, V_t, W_h, W_mu, W_m, b_m, *, eps=1e-4, block_b=1024):
    """Channels-major GVP forward (the intended model-wide layout convention).

    s_t: (n, B), V_t: (3, v, B).  Returns (s'_t: (m, B), V'_t: (3, mu, B)).
    Using this entry point throughout a model removes all layout transposes.
    """
    n, B = s_t.shape
    v = V_t.shape[1]
    h = W_h.shape[0]
    mu = W_mu.shape[0]
    m = W_m.shape[0]

    # --- weight prep (tiny; folded by jit) ----------------------------------
    f32 = jnp.float32
    eye3 = jnp.eye(3, dtype=f32)
    Wh_blk = jnp.kron(eye3, W_h.astype(f32))          # (3h, 3v)
    Wmu_blk = jnp.kron(eye3, W_mu.astype(f32))        # (3mu, 3h)
    Wm_s = W_m[:, :n].astype(f32)                     # (m, n)
    Wm_h = W_m[:, n:].astype(f32)                     # (m, h)
    bm = b_m.astype(f32).reshape(m, 1)

    # (3, v, B) -> (3v, B): free (leading-dim merge), row index = c*v + vi.
    V_flat = V_t.reshape(3 * v, B)

    # --- choose batch tile; pad the lane axis if B doesn't divide -----------
    if B > block_b:
        assert block_b % 128 == 0, "block_b must be a multiple of 128"
        TB = block_b
        Bp = -(-B // TB) * TB
        if Bp != B:
            pad = Bp - B
            s_t = jnp.pad(s_t, ((0, 0), (0, pad)))
            V_flat = jnp.pad(V_flat, ((0, 0), (0, pad)))
    else:
        TB = B      # single block spanning the full lane dim (legal even <128)
        Bp = B

    grid = (Bp // TB,)

    itemsize = jnp.dtype(s_t.dtype).itemsize
    cost = pl.CostEstimate(
        flops=2 * B * (3 * v * h + 3 * h * mu + (n + h) * m),
        transcendentals=B * (h + 2 * mu),
        bytes_accessed=itemsize * B * (n + 3 * v + m + 3 * mu)
        + 4 * (Wh_blk.size + Wmu_blk.size + W_m.size + m),
    )

    kernel = functools.partial(gvp_kernel, h=h, mu=mu, eps=eps)
    s_out, v_out = pl.pallas_call(
        kernel,
        out_shape=(jax.ShapeDtypeStruct((m, Bp), s_t.dtype),
                   jax.ShapeDtypeStruct((3 * mu, Bp), V_t.dtype)),
        grid=grid,
        in_specs=[
            pl.BlockSpec((n, TB), lambda i: (0, i)),
            pl.BlockSpec((3 * v, TB), lambda i: (0, i)),
            # weights: constant index_map -> fetched once, resident in VMEM
            pl.BlockSpec((3 * h, 3 * v), lambda i: (0, 0)),
            pl.BlockSpec((3 * mu, 3 * h), lambda i: (0, 0)),
            pl.BlockSpec((m, n), lambda i: (0, 0)),
            pl.BlockSpec((m, h), lambda i: (0, 0)),
            pl.BlockSpec((m, 1), lambda i: (0, 0)),
        ],
        out_specs=(
            pl.BlockSpec((m, TB), lambda i: (0, i)),
            pl.BlockSpec((3 * mu, TB), lambda i: (0, i)),
        ),
        compiler_params=pltpu.CompilerParams(
            dimension_semantics=("parallel",)),   # megacore-shardable on v7x
        cost_estimate=cost,
    )(s_t, V_flat, Wh_blk, Wmu_blk, Wm_s, Wm_h, bm)

    if Bp != B:
        s_out = s_out[:, :B]
        v_out = v_out[:, :B]
    return s_out, v_out.reshape(3, mu, B)


@functools.partial(jax.jit, static_argnames=("eps", "block_b"))
def gvp_forward(s, V, W_h, W_mu, W_m, b_m, *, eps=1e-4, block_b=1024):
    """PyTorch-layout wrapper: s (B, n), V (B, v, 3) -> (B, m), (B, mu, 3).

    The transposes below exist only at this compatibility boundary; a model
    that adopts the channels-major convention calls gvp_forward_t directly and
    pays no extra HBM transpose passes.
    """
    s_t = s.T                                    # (n, B)
    V_t = jnp.transpose(V, (2, 1, 0))            # (3, v, B)
    s_out_t, V_out_t = gvp_forward_t(s_t, V_t, W_h, W_mu, W_m, b_m,
                                     eps=eps, block_b=block_b)
    return s_out_t.T, jnp.transpose(V_out_t, (2, 1, 0))


def gvp_reference(s, V, W_h, W_mu, W_m, b_m, *, eps=1e-4):
    """Pure-JAX reference mirroring the PyTorch forward exactly."""
    V_h = jnp.einsum('hv,bvd->bhd', W_h, V)
    V_mu = jnp.einsum('mh,bhd->bmd', W_mu, V_h)
    s_h = jnp.maximum(jnp.linalg.norm(V_h, axis=-1), eps)
    s_hn = jnp.concatenate([s, s_h], axis=-1)
    s_m = s_hn @ W_m.T + b_m
    s_dash = jax.nn.relu(s_m)
    v_mu = jnp.maximum(jnp.linalg.norm(V_mu, axis=-1, keepdims=True), eps)
    V_dash = jax.nn.sigmoid(v_mu) * V_mu
    return s_dash, V_dash


def _kaiming_uniform(key, shape, fan_in):
    # matches torch.nn.init.kaiming_uniform_(a=sqrt(5)): bound = 1/sqrt(fan_in)
    bound = 1.0 / math.sqrt(fan_in)
    return jax.random.uniform(key, shape, jnp.float32, -bound, bound)


if __name__ == "__main__":
    # module config: in_dims=(n=16, v=4), out_dims=(m=32, mu=8) -> h=max(v,mu)=8
    n, v, m, mu = 16, 4, 32, 8
    h = max(v, mu)
    eps = 1e-4

    key = jax.random.PRNGKey(0)
    k_wh, k_wmu, k_wm, k_bm = jax.random.split(key, 4)

    # deterministic parameter init (shapes per GVP.__init__)
    W_h = _kaiming_uniform(k_wh, (h, v), fan_in=v)
    W_mu = _kaiming_uniform(k_wmu, (mu, h), fan_in=h)
    W_m = _kaiming_uniform(k_wm, (m, h + n), fan_in=h + n)
    b_m = _kaiming_uniform(k_bm, (m,), fan_in=h + n)

    ok = True
    # (1) small shapes (single block); (2) larger B exercising the tiled grid
    #     with a non-divisible tail (padded + sliced in the wrapper).
    for B, block_b in ((8, 1024), (2000, 512)):
        ks, kv = jax.random.split(jax.random.fold_in(key, B))
        s = jax.random.normal(ks, (B, n), jnp.float32)
        V = jax.random.normal(kv, (B, v, 3), jnp.float32)

        s_dash, V_dash = gvp_forward(s, V, W_h, W_mu, W_m, b_m,
                                     eps=eps, block_b=block_b)
        jax.block_until_ready((s_dash, V_dash))

        s_ref, V_ref = gvp_reference(s, V, W_h, W_mu, W_m, b_m, eps=eps)
        ok &= (s_dash.shape == (B, m)) and (V_dash.shape == (B, mu, 3))
        ok &= bool(jnp.allclose(s_dash, s_ref, rtol=1e-5, atol=1e-5))
        ok &= bool(jnp.allclose(V_dash, V_ref, rtol=1e-5, atol=1e-5))

    assert ok
    print("KERNEL_OK")
</pallas_src>

<mosaic_0001>
module attributes {stable_mosaic.version = 11 : i64} {
  func.func @gvp_kernel(%arg0: i32, %arg1: memref<16x8xf32, #tpu.memory_space<vmem>>, %arg2: memref<12x8xf32, #tpu.memory_space<vmem>>, %arg3: memref<24x12xf32, #tpu.memory_space<vmem>>, %arg4: memref<24x24xf32, #tpu.memory_space<vmem>>, %arg5: memref<32x16xf32, #tpu.memory_space<vmem>>, %arg6: memref<32x8xf32, #tpu.memory_space<vmem>>, %arg7: memref<32x1xf32, #tpu.memory_space<vmem>>, %arg8: memref<32x8xf32, #tpu.memory_space<vmem>>, %arg9: memref<24x8xf32, #tpu.memory_space<vmem>>) attributes {dimension_semantics = [#tpu.dimension_semantics<parallel>], iteration_bounds = array<i64: 1>, scalar_prefetch = 0 : i64, scratch_operands = 0 : i64, tpu.core_type = #tpu.core_type<tc>, window_params = [{transform_indices = @transform_0, window_bounds = array<i64: 16, 8>}, {transform_indices = @transform_1, window_bounds = array<i64: 12, 8>}, {pipeline_mode = #tpu.pipeline_mode<synchronous>, transform_indices = @transform_2, window_bounds = array<i64: 24, 12>}, {pipeline_mode = #tpu.pipeline_mode<synchronous>, transform_indices = @transform_3, window_bounds = array<i64: 24, 24>}, {pipeline_mode = #tpu.pipeline_mode<synchronous>, transform_indices = @transform_4, window_bounds = array<i64: 32, 16>}, {pipeline_mode = #tpu.pipeline_mode<synchronous>, transform_indices = @transform_5, window_bounds = array<i64: 32, 8>}, {pipeline_mode = #tpu.pipeline_mode<synchronous>, transform_indices = @transform_6, window_bounds = array<i64: 32, 1>}, {transform_indices = @transform_7, window_bounds = array<i64: 32, 8>}, {transform_indices = @transform_8, window_bounds = array<i64: 24, 8>}]} {
    %c0 = arith.constant 0 : index
    %c0_0 = arith.constant 0 : index
    %0 = vector.load %arg1[%c0, %c0_0] : memref<16x8xf32, #tpu.memory_space<vmem>>, vector<16x8xf32>
    %c0_1 = arith.constant 0 : index
    %c0_2 = arith.constant 0 : index
    %1 = vector.load %arg2[%c0_1, %c0_2] : memref<12x8xf32, #tpu.memory_space<vmem>>, vector<12x8xf32>
    %c0_3 = arith.constant 0 : index
    %c0_4 = arith.constant 0 : index
    %2 = vector.load %arg3[%c0_3, %c0_4] : memref<24x12xf32, #tpu.memory_space<vmem>>, vector<24x12xf32>
    %cst = arith.constant dense<0.000000e+00> : vector<24x8xf32>
    %3 = tpu.matmul %2, %1, %cst {dimension_numbers = #tpu.dot_dimension_numbers<[1], [0], [0], [1], [0, 0, 1, 1], [], []>} : vector<24x12xf32>, vector<12x8xf32>, vector<24x8xf32> -> vector<24x8xf32>
    %c0_5 = arith.constant 0 : index
    %c0_6 = arith.constant 0 : index
    %4 = vector.load %arg4[%c0_5, %c0_6] : memref<24x24xf32, #tpu.memory_space<vmem>>, vector<24x24xf32>
    %cst_7 = arith.constant dense<0.000000e+00> : vector<24x8xf32>
    %5 = tpu.matmul %4, %3, %cst_7 {dimension_numbers = #tpu.dot_dimension_numbers<[1], [0], [0], [1], [0, 0, 1, 1], [], []>} : vector<24x24xf32>, vector<24x8xf32>, vector<24x8xf32> -> vector<24x8xf32>
    %6 = vector.extract_strided_slice %3 {offsets = [0, 0], sizes = [8, 8], strides = [1, 1]} : vector<24x8xf32> to vector<8x8xf32>
    %7 = vector.extract_strided_slice %3 {offsets = [0, 0], sizes = [8, 8], strides = [1, 1]} : vector<24x8xf32> to vector<8x8xf32>
    %8 = arith.mulf %6, %7 : vector<8x8xf32>
    %9 = vector.extract_strided_slice %3 {offsets = [8, 0], sizes = [8, 8], strides = [1, 1]} : vector<24x8xf32> to vector<8x8xf32>
    %10 = vector.extract_strided_slice %3 {offsets = [8, 0], sizes = [8, 8], strides = [1, 1]} : vector<24x8xf32> to vector<8x8xf32>
    %11 = arith.mulf %9, %10 : vector<8x8xf32>
    %12 = arith.addf %8, %11 : vector<8x8xf32>
    %13 = vector.extract_strided_slice %3 {offsets = [16, 0], sizes = [8, 8], strides = [1, 1]} : vector<24x8xf32> to vector<8x8xf32>
    %14 = vector.extract_strided_slice %3 {offsets = [16, 0], sizes = [8, 8], strides = [1, 1]} : vector<24x8xf32> to vector<8x8xf32>
    %15 = arith.mulf %13, %14 : vector<8x8xf32>
    %16 = arith.addf %12, %15 : vector<8x8xf32>
    %17 = math.sqrt %16 : vector<8x8xf32>
    %cst_8 = arith.constant 9.99999974E-5 : f32
    %18 = vector.broadcast %cst_8 : f32 to vector<8x8xf32>
    %19 = arith.maximumf %17, %18 : vector<8x8xf32>
    %c0_9 = arith.constant 0 : index
    %c0_10 = arith.constant 0 : index
    %20 = vector.load %arg5[%c0_9, %c0_10] : memref<32x16xf32, #tpu.memory_space<vmem>>, vector<32x16xf32>
    %cst_11 = arith.constant dense<0.000000e+00> : vector<32x8xf32>
    %21 = tpu.matmul %20, %0, %cst_11 {dimension_numbers = #tpu.dot_dimension_numbers<[1], [0], [0], [1], [0, 0, 1, 1], [], []>} : vector<32x16xf32>, vector<16x8xf32>, vector<32x8xf32> -> vector<32x8xf32>
    %c0_12 = arith.constant 0 : index
    %c0_13 = arith.constant 0 : index
    %22 = vector.load %arg6[%c0_12, %c0_13] : memref<32x8xf32, #tpu.memory_space<vmem>>, vector<32x8xf32>
    %cst_14 = arith.constant dense<0.000000e+00> : vector<32x8xf32>
    %23 = tpu.matmul %22, %19, %cst_14 {dimension_numbers = #tpu.dot_dimension_numbers<[1], [0], [0], [1], [0, 0, 1, 1], [], []>} : vector<32x8xf32>, vector<8x8xf32>, vector<32x8xf32> -> vector<32x8xf32>
    %24 = arith.addf %21, %23 : vector<32x8xf32>
    %c0_15 = arith.constant 0 : index
    %c0_16 = arith.constant 0 : index
    %25 = vector.load %arg7[%c0_15, %c0_16] : memref<32x1xf32, #tpu.memory_space<vmem>>, vector<32x1xf32>
    %26 = vector.broadcast %25 : vector<32x1xf32> to vector<32x8xf32>
    %27 = arith.addf %24, %26 : vector<32x8xf32>
    %cst_17 = arith.constant 0.000000e+00 : f32
    %28 = vector.broadcast %cst_17 : f32 to vector<32x8xf32>
    %29 = arith.maximumf %27, %28 : vector<32x8xf32>
    %c0_18 = arith.constant 0 : index
    %c0_19 = arith.constant 0 : index
    %30 = vector.load %arg8[%c0_18, %c0_19] : memref<32x8xf32, #tpu.memory_space<vmem>>, vector<32x8xf32>
    tpu.vector_store %arg8[%c0_18, %c0_19], %29 {strides = array<i32>} : memref<32x8xf32, #tpu.memory_space<vmem>>, vector<32x8xf32>,
    %31 = vector.extract_strided_slice %5 {offsets = [0, 0], sizes = [8, 8], strides = [1, 1]} : vector<24x8xf32> to vector<8x8xf32>
    %32 = vector.extract_strided_slice %5 {offsets = [0, 0], sizes = [8, 8], strides = [1, 1]} : vector<24x8xf32> to vector<8x8xf32>
    %33 = arith.mulf %31, %32 : vector<8x8xf32>
    %34 = vector.extract_strided_slice %5 {offsets = [8, 0], sizes = [8, 8], strides = [1, 1]} : vector<24x8xf32> to vector<8x8xf32>
    %35 = vector.extract_strided_slice %5 {offsets = [8, 0], sizes = [8, 8], strides = [1, 1]} : vector<24x8xf32> to vector<8x8xf32>
    %36 = arith.mulf %34, %35 : vector<8x8xf32>
    %37 = arith.addf %33, %36 : vector<8x8xf32>
    %38 = vector.extract_strided_slice %5 {offsets = [16, 0], sizes = [8, 8], strides = [1, 1]} : vector<24x8xf32> to vector<8x8xf32>
    %39 = vector.extract_strided_slice %5 {offsets = [16, 0], sizes = [8, 8], strides = [1, 1]} : vector<24x8xf32> to vector<8x8xf32>
    %40 = arith.mulf %38, %39 : vector<8x8xf32>
    %41 = arith.addf %37, %40 : vector<8x8xf32>
    %42 = math.sqrt %41 : vector<8x8xf32>
    %cst_20 = arith.constant 9.99999974E-5 : f32
    %43 = vector.broadcast %cst_20 : f32 to vector<8x8xf32>
    %44 = arith.maximumf %42, %43 : vector<8x8xf32>
    %45 = arith.negf %44 : vector<8x8xf32>
    %46 = math.exp %45 : vector<8x8xf32>
    %cst_21 = arith.constant 1.000000e+00 : f32
    %47 = vector.broadcast %cst_21 : f32 to vector<8x8xf32>
    %48 = arith.addf %47, %46 : vector<8x8xf32>
    %49 = arith.divf %47, %48 : vector<8x8xf32>
    %50 = tpu.concatenate %49, %49, %49 in 0 : vector<8x8xf32>, vector<8x8xf32>, vector<8x8xf32> -> vector<24x8xf32>
    %51 = arith.mulf %5, %50 : vector<24x8xf32>
    %c0_22 = arith.constant 0 : index
    %c0_23 = arith.constant 0 : index
    %52 = vector.load %arg9[%c0_22, %c0_23] : memref<24x8xf32, #tpu.memory_space<vmem>>, vector<24x8xf32>
    tpu.vector_store %arg9[%c0_22, %c0_23], %51 {strides = array<i32>} : memref<24x8xf32, #tpu.memory_space<vmem>>, vector<24x8xf32>,
    return
  }
  func.func @transform_0(%arg0: i32) -> (i32, i32) {
    %c0_i32 = arith.constant 0 : i32
    %c0_i32_0 = arith.constant 0 : i32
    return %c0_i32, %arg0 : i32, i32
  }
  func.func @transform_1(%arg0: i32) -> (i32, i32) {
    %c0_i32 = arith.constant 0 : i32
    %c0_i32_0 = arith.constant 0 : i32
    return %c0_i32, %arg0 : i32, i32
  }
  func.func @transform_2(%arg0: i32) -> (i32, i32) {
    %c0_i32 = arith.constant 0 : i32
    %c0_i32_0 = arith.constant 0 : i32
    %c0_i32_1 = arith.constant 0 : i32
    return %c0_i32, %c0_i32_0 : i32, i32
  }
  func.func @transform_3(%arg0: i32) -> (i32, i32) {
    %c0_i32 = arith.constant 0 : i32
    %c0_i32_0 = arith.constant 0 : i32
    %c0_i32_1 = arith.constant 0 : i32
    return %c0_i32, %c0_i32_0 : i32, i32
  }
  func.func @transform_4(%arg0: i32) -> (i32, i32) {
    %c0_i32 = arith.constant 0 : i32
    %c0_i32_0 = arith.constant 0 : i32
    %c0_i32_1 = arith.constant 0 : i32
    return %c0_i32, %c0_i32_0 : i32, i32
  }
  func.func @transform_5(%arg0: i32) -> (i32, i32) {
    %c0_i32 = arith.constant 0 : i32
    %c0_i32_0 = arith.constant 0 : i32
    %c0_i32_1 = arith.constant 0 : i32
    return %c0_i32, %c0_i32_0 : i32, i32
  }
  func.func @transform_6(%arg0: i32) -> (i32, i32) {
    %c0_i32 = arith.constant 0 : i32
    %c0_i32_0 = arith.constant 0 : i32
    %c0_i32_1 = arith.constant 0 : i32
    return %c0_i32, %c0_i32_0 : i32, i32
  }
  func.func @transform_7(%arg0: i32) -> (i32, i32) {
    %c0_i32 = arith.constant 0 : i32
    %c0_i32_0 = arith.constant 0 : i32
    return %c0_i32, %arg0 : i32, i32
  }
  func.func @transform_8(%arg0: i32) -> (i32, i32) {
    %c0_i32 = arith.constant 0 : i32
    %c0_i32_0 = arith.constant 0 : i32
    return %c0_i32, %arg0 : i32, i32
  }
}

</mosaic_0001>

<llo_original>
// kernel: gvp_forward.1
$region0: #{gvp_forward.1}
  #allocation0 [shape = 'u32[]', space=smem, size = 0x4, offset = 0x4, fixed_abs, tag = 'smem constant byte address 0x4 - core index']
  #allocation1 [shape = 'u32[144,128]{1,0:T(1,128)}', space=vmem, size = 0x12000, scoped, tag = 'internal scratch']
  %s0 = inlined_call_operand.vmem [shape: f32[16,8], index: 0, kind: input, shape index: {}]
  %s1 = inlined_call_operand.vmem [shape: f32[12,8], index: 1, kind: input, shape index: {}]
  %s2 = inlined_call_operand.vmem [shape: f32[24,12], index: 2, kind: input, shape index: {}]
  %s3 = inlined_call_operand.vmem [shape: f32[24,24], index: 3, kind: input, shape index: {}]
  %s4 = inlined_call_operand.vmem [shape: f32[32,16], index: 4, kind: input, shape index: {}]
  %s5 = inlined_call_operand.vmem [shape: f32[32,8], index: 5, kind: input, shape index: {}]
  %s6 = inlined_call_operand.vmem [shape: f32[32,1], index: 6, kind: input, shape index: {}]
  %s7 = inlined_call_operand.vmem [shape: f32[32,8], index: 7, kind: output, shape index: {0}]
  %s8 = inlined_call_operand.vmem [shape: f32[24,8], index: 8, kind: output, shape index: {1}]
  %9 = xla_tuple %s7, %s8
  %s10 = sld [smem:[#allocation0]]
  $region46: #{gvp_forward.1} parent=0
    _
  %s12 = ssub.s32 1, %s10
  %s13 = scalar_select 0, %s12, %s10
  // Predicated region
  $region2: #{gvp_forward.1} parent=0 // pred_check
    _
  $region3: #{gvp_forward.1} parent=0 // pred_check_branch
    %15 = sbr.rel (0) target = $region5
  $region4: #{gvp_forward.1} parent=0 // pred_region
    _
  $region5: #{gvp_forward.1} parent=0 // pred_fallthru
    _
  // Predicated region
  $region6: #{gvp_forward.1} parent=0 // pred_check
    _
  $region7: #{gvp_forward.1} parent=0 // pred_check_branch
    %17 = sbr.rel (0) target = $region9
  $region8: #{gvp_forward.1} parent=0 // pred_region
    _
  $region9: #{gvp_forward.1} parent=0 // pred_fallthru
    _
  // Predicated region
  $region10: #{gvp_forward.1} parent=0 // pred_check
    _
  $region11: #{gvp_forward.1} parent=0 // pred_check_branch
    %19 = sbr.rel (0) target = $region13
  $region12: #{gvp_forward.1} parent=0 // pred_region
    _
  $region13: #{gvp_forward.1} parent=0 // pred_fallthru
    _
  // Predicated region
  $region14: #{gvp_forward.1} parent=0 // pred_check
    _
  $region15: #{gvp_forward.1} parent=0 // pred_check_branch
    %21 = sbr.rel (0) target = $region17
  $region16: #{gvp_forward.1} parent=0 // pred_region
    _
  $region17: #{gvp_forward.1} parent=0 // pred_fallthru
    _
  // Predicated region
  $region18: #{gvp_forward.1} parent=0 // pred_check
    _
  $region19: #{gvp_forward.1} parent=0 // pred_check_branch
    %23 = sbr.rel (0) target = $region21
  $region20: #{gvp_forward.1} parent=0 // pred_region
    _
  $region21: #{gvp_forward.1} parent=0 // pred_fallthru
    _
  // Predicated region
  $region22: #{gvp_forward.1} parent=0 // pred_check
    _
  $region23: #{gvp_forward.1} parent=0 // pred_check_branch
    %25 = sbr.rel (0) target = $region25
  $region24: #{gvp_forward.1} parent=0 // pred_region
    _
  $region25: #{gvp_forward.1} parent=0 // pred_fallthru
    _
  // Predicated region
  $region26: #{gvp_forward.1} parent=0 // pred_check
    _
  $region27: #{gvp_forward.1} parent=0 // pred_check_branch
    %27 = sbr.rel (0) target = $region29
  $region28: #{gvp_forward.1} parent=0 // pred_region
    _
  $region29: #{gvp_forward.1} parent=0 // pred_fallthru
    _
  %v28 = vld [vmem:[%s0] sm:$0xff]
  %v29 = vld [vmem:[%s0 + $0x8] sm:$0xff]
  %v30 = vld [vmem:[%s1] sm:$0xff]
  %v31 = vld [vmem:[%s1 + $0x8] sm:$0xf]
  %v32 = vld [vmem:[%s2] sm:$0xff]
  %v33 = vld [vmem:[%s2 + $0x8] sm:$0xff]
  %v34 = vld [vmem:[%s2 + $0x10] sm:$0xff]
  %vm35 = vcmask 97280
  %v37 = vsel %vm35, %v32, 0
  %v40 = vsel %vm35, %v33, 0
  %v43 = vsel %vm35, %v34, 0
  %vm45 = vcmask 1043456
  %v47 = vsel %vm45, %v31, 0
  %49 = vmatprep.subr.mxu0 0.0
  %50 = vmatpush1.msra.mxu0 0.0
  %51 = vmatprep.subr.mxu0 0.0
  %52 = vmatpush1.msra.mxu0 0.0
  %53 = vmatprep.subr.mxu0 0.0
  %54 = vmatpush1.msra.mxu0 0.0
  %55 = vmatprep.subr.mxu0 0.0
  %56 = vmatpush1.msra.mxu0 0.0
  %57 = vmatprep.subr.mxu0 0.0
  %58 = vmatpush1.msra.mxu0 0.0
  %59 = vmatprep.subr.mxu0 0.0
  %60 = vmatpush1.msra.mxu0 0.0
  %61 = vmatprep.subr.mxu0 0.0
  %62 = vmatpush1.msra.mxu0 0.0
  %63 = vmatprep.subr.mxu0 0.0
  %64 = vmatpush1.msra.mxu0 0.0
  %65 = vmatprep.subr.mxu0 0.0
  %66 = vmatpush1.msra.mxu0 0.0
  %67 = vmatprep.subr.mxu0 0.0
  %68 = vmatpush1.msra.mxu0 0.0
  %69 = vmatprep.subr.mxu0 0.0
  %70 = vmatpush1.msra.mxu0 0.0
  %71 = vmatprep.subr.mxu0 0.0
  %72 = vmatpush1.msra.mxu0 0.0
  %73 = vmatprep.subr.mxu0 0.0
  %74 = vmatpush1.msra.mxu0 0.0
  %75 = vmatprep.subr.mxu0 0.0
  %76 = vmatpush1.msra.mxu0 0.0
  %77 = vmatprep.subr.mxu0 0.0
  %78 = vmatpush1.msra.mxu0 %v47
  %79 = vmatprep.subr.mxu0 0.0
  %80 = vmatpush1.msra.mxu0 %v30
  %81 = vmatprep.subr.mxu0 0.0
  %82 = vmatpush2.msra.mxu0 0.0
  %83 = vmatprep.subr.mxu0 0.0
  %84 = vmatpush2.msra.mxu0 0.0
  %85 = vmatprep.subr.mxu0 0.0
  %86 = vmatpush2.msra.mxu0 0.0
  %87 = vmatprep.subr.mxu0 0.0
  %88 = vmatpush2.msra.mxu0 0.0
  %89 = vmatprep.subr.mxu0 0.0
  %90 = vmatpush2.msra.mxu0 0.0
  %91 = vmatprep.subr.mxu0 0.0
  %92 = vmatpush2.msra.mxu0 0.0
  %93 = vmatprep.subr.mxu0 0.0
  %94 = vmatpush2.msra.mxu0 0.0
  %95 = vmatprep.subr.mxu0 0.0
  %96 = vmatpush2.msra.mxu0 0.0
  %97 = vmatprep.subr.mxu0 0.0
  %98 = vmatpush2.msra.mxu0 0.0
  %99 = vmatprep.subr.mxu0 0.0
  %100 = vmatpush2.msra.mxu0 0.0
  %101 = vmatprep.subr.mxu0 0.0
  %102 = vmatpush2.msra.mxu0 0.0
  %103 = vmatprep.subr.mxu0 0.0
  %104 = vmatpush2.msra.mxu0 0.0
  %105 = vmatprep.subr.mxu0 0.0
  %106 = vmatpush2.msra.mxu0 0.0
  %107 = vmatprep.subr.mxu0 0.0
  %108 = vmatpush2.msra.mxu0 0.0
  %109 = vmatprep.subr.mxu0 0.0
  %110 = vmatpush2.msra.mxu0 0.0
  %111 = vmatprep.subr.mxu0 0.0
  %112 = vmatpush2.msra.mxu0 0.0
  %113 = vmatprep.mubr.f32.mxu0 0.0
  %114 = vmatmul.mubr.f32.gmra.mxu0 %v37
  %v115 = vpop.f32.mrf.mxu0
  %v116 = vadd.f32 0.0, %v115
  %v117 = vpop.f32.mrf.mxu0
  %118 = vmatprep.mubr.f32.mxu0 0.0
  %119 = vmatmul.mubr.f32.gmra.mxu0 %v40
  %v120 = vpop.f32.mrf.mxu0
  %v121 = vadd.f32 0.0, %v120
  %v122 = vpop.f32.mrf.mxu0
  %123 = vmatprep.mubr.f32.mxu0 0.0
  %124 = vmatmul.mubr.f32.gmra.mxu0 %v43
  %v125 = vpop.f32.mrf.mxu0
  %v126 = vadd.f32 0.0, %v125
  %v127 = vpop.f32.mrf.mxu0
  %128 = vdwg.mxu0
  %v129 = vld [vmem:[%s3] sm:$0xff]
  %v130 = vld [vmem:[%s3 + $0x8] sm:$0xff]
  %v131 = vld [vmem:[%s3 + $0x10] sm:$0xff]
  %vm132 = vcmask 195584
  %v134 = vsel %vm132, %v129, 0
  %v137 = vsel %vm132, %v130, 0
  %v140 = vsel %vm132, %v131, 0
  %142 = vmatprep.subr.mxu0 0.0
  %143 = vmatpush1.msra.mxu0 0.0
  %144 = vmatprep.subr.mxu0 0.0
  %145 = vmatpush1.msra.mxu0 0.0
  %146 = vmatprep.subr.mxu0 0.0
  %147 = vmatpush1.msra.mxu0 0.0
  %148 = vmatprep.subr.mxu0 0.0
  %149 = vmatpush1.msra.mxu0 0.0
  %150 = vmatprep.subr.mxu0 0.0
  %151 = vmatpush1.msra.mxu0 0.0
  %152 = vmatprep.subr.mxu0 0.0
  %153 = vmatpush1.msra.mxu0 0.0
  %154 = vmatprep.subr.mxu0 0.0
  %155 = vmatpush1.msra.mxu0 0.0
  %156 = vmatprep.subr.mxu0 0.0
  %157 = vmatpush1.msra.mxu0 0.0
  %158 = vmatprep.subr.mxu0 0.0
  %159 = vmatpush1.msra.mxu0 0.0
  %160 = vmatprep.subr.mxu0 0.0
  %161 = vmatpush1.msra.mxu0 0.0
  %162 = vmatprep.subr.mxu0 0.0
  %163 = vmatpush1.msra.mxu0 0.0
  %164 = vmatprep.subr.mxu0 0.0
  %165 = vmatpush1.msra.mxu0 0.0
  %166 = vmatprep.subr.mxu0 0.0
  %167 = vmatpush1.msra.mxu0 0.0
  %168 = vmatprep.subr.mxu0 0.0
  %169 = vmatpush1.msra.mxu0 %v126
  %170 = vmatprep.subr.mxu0 0.0
  %171 = vmatpush1.msra.mxu0 %v121
  %172 = vmatprep.subr.mxu0 0.0
  %173 = vmatpush1.msra.mxu0 %v116
  %174 = vmatprep.subr.mxu0 0.0
  %175 = vmatpush2.msra.mxu0 0.0
  %176 = vmatprep.subr.mxu0 0.0
  %177 = vmatpush2.msra.mxu0 0.0
  %178 = vmatprep.subr.mxu0 0.0
  %179 = vmatpush2.msra.mxu0 0.0
  %180 = vmatprep.subr.mxu0 0.0
  %181 = vmatpush2.msra.mxu0 0.0
  %182 = vmatprep.subr.mxu0 0.0
  %183 = vmatpush2.msra.mxu0 0.0
  %184 = vmatprep.subr.mxu0 0.0
  %185 = vmatpush2.msra.mxu0 0.0
  %186 = vmatprep.subr.mxu0 0.0
  %187 = vmatpush2.msra.mxu0 0.0
  %188 = vmatprep.subr.mxu0 0.0
  %189 = vmatpush2.msra.mxu0 0.0
  %190 = vmatprep.subr.mxu0 0.0
  %191 = vmatpush2.msra.mxu0 0.0
  %192 = vmatprep.subr.mxu0 0.0
  %193 = vmatpush2.msra.mxu0 0.0
  %194 = vmatprep.subr.mxu0 0.0
  %195 = vmatpush2.msra.mxu0 0.0
  %196 = vmatprep.subr.mxu0 0.0
  %197 = vmatpush2.msra.mxu0 0.0
  %198 = vmatprep.subr.mxu0 0.0
  %199 = vmatpush2.msra.mxu0 0.0
  %200 = vmatprep.subr.mxu0 0.0
  %201 = vmatpush2.msra.mxu0 0.0
  %202 = vmatprep.subr.mxu0 0.0
  %203 = vmatpush2.msra.mxu0 0.0
  %204 = vmatprep.subr.mxu0 0.0
  %205 = vmatpush2.msra.mxu0 0.0
  %206 = vmatprep.mubr.f32.mxu0 0.0
  %207 = vmatmul.mubr.f32.gmra.mxu0 %v134
  %v208 = vpop.f32.mrf.mxu0
  %v209 = vadd.f32 0.0, %v208
  %v210 = vpop.f32.mrf.mxu0
  %211 = vmatprep.mubr.f32.mxu0 0.0
  %212 = vmatmul.mubr.f32.gmra.mxu0 %v137
  %v213 = vpop.f32.mrf.mxu0
  %v214 = vadd.f32 0.0, %v213
  %v215 = vpop.f32.mrf.mxu0
  %216 = vmatprep.mubr.f32.mxu0 0.0
  %217 = vmatmul.mubr.f32.gmra.mxu0 %v140
  %v218 = vpop.f32.mrf.mxu0
  %v219 = vadd.f32 0.0, %v218
  %v220 = vpop.f32.mrf.mxu0
  %221 = vdwg.mxu0
  %v222 = vmul.f32 %v116, %v116
  %v223 = vmul.f32 %v121, %v121
  %v224 = vadd.f32 %v222, %v223
  %v225 = vmul.f32 %v126, %v126
  %v226 = vadd.f32 %v224, %v225
  %v227 = vrsqrt.pop %v226
  %v228 = vmul.f32 %v226, %v227
  %vm229 = vcmp.eq.f32.partialorder %v226, inf
  %v230 = vsel %vm229, %v226, %v228
  %vm231 = vcmp.eq.f32.partialorder %v226, 0.0
  %v232 = vand.u32 %v226, 2147483648
  %v233 = vsel %vm231, %v232, %v230
  %v234 = vmax.f32 %v233, 0.0001
  %v235 = vld [vmem:[%s4] sm:$0xff]
  %v236 = vld [vmem:[%s4 + $0x8] sm:$0xff]
  %v237 = vld [vmem:[%s4 + $0x10] sm:$0xff]
  %v238 = vld [vmem:[%s4 + $0x18] sm:$0xff]
  %v239 = vld [vmem:[%s5] sm:$0xff]
  %v240 = vld [vmem:[%s5 + $0x8] sm:$0xff]
  %v241 = vld [vmem:[%s5 + $0x10] sm:$0xff]
  %v242 = vld [vmem:[%s5 + $0x18] sm:$0xff]
  %vm243 = vcmask 64512
  %v245 = vsel %vm243, %v239, 0
  %v248 = vsel %vm243, %v240, 0
  %v251 = vsel %vm243, %v241, 0
  %v254 = vsel %vm243, %v242, 0
  %256 = vmatprep.subr.mxu0 0.0
  %257 = vmatpush1.msra.mxu0 0.0
  %258 = vmatprep.subr.mxu0 0.0
  %259 = vmatpush1.msra.mxu0 0.0
  %260 = vmatprep.subr.mxu0 0.0
  %261 = vmatpush1.msra.mxu0 0.0
  %262 = vmatprep.subr.mxu0 0.0
  %263 = vmatpush1.msra.mxu0 0.0
  %264 = vmatprep.subr.mxu0 0.0
  %265 = vmatpush1.msra.mxu0 0.0
  %266 = vmatprep.subr.mxu0 0.0
  %267 = vmatpush1.msra.mxu0 0.0
  %268 = vmatprep.subr.mxu0 0.0
  %269 = vmatpush1.msra.mxu0 0.0
  %270 = vmatprep.subr.mxu0 0.0
  %271 = vmatpush1.msra.mxu0 0.0
  %272 = vmatprep.subr.mxu0 0.0
  %273 = vmatpush1.msra.mxu0 0.0
  %274 = vmatprep.subr.mxu0 0.0
  %275 = vmatpush1.msra.mxu0 0.0
  %276 = vmatprep.subr.mxu0 0.0
  %277 = vmatpush1.msra.mxu0 0.0
  %278 = vmatprep.subr.mxu0 0.0
  %279 = vmatpush1.msra.mxu0 0.0
  %280 = vmatprep.subr.mxu0 0.0
  %281 = vmatpush1.msra.mxu0 0.0
  %282 = vmatprep.subr.mxu0 0.0
  %283 = vmatpush1.msra.mxu0 0.0
  %284 = vmatprep.subr.mxu0 0.0
  %285 = vmatpush1.msra.mxu0 0.0
  %286 = vmatprep.subr.mxu0 0.0
  %287 = vmatpush1.msra.mxu0 %v234
  %288 = vmatprep.subr.mxu0 0.0
  %289 = vmatpush2.msra.mxu0 0.0
  %290 = vmatprep.subr.mxu0 0.0
  %291 = vmatpush2.msra.mxu0 0.0
  %292 = vmatprep.subr.mxu0 0.0
  %293 = vmatpush2.msra.mxu0 0.0
  %294 = vmatprep.subr.mxu0 0.0
  %295 = vmatpush2.msra.mxu0 0.0
  %296 = vmatprep.subr.mxu0 0.0
  %297 = vmatpush2.msra.mxu0 0.0
  %298 = vmatprep.subr.mxu0 0.0
  %299 = vmatpush2.msra.mxu0 0.0
  %300 = vmatprep.subr.mxu0 0.0
  %301 = vmatpush2.msra.mxu0 0.0
  %302 = vmatprep.subr.mxu0 0.0
  %303 = vmatpush2.msra.mxu0 0.0
  %304 = vmatprep.subr.mxu0 0.0
  %305 = vmatpush2.msra.mxu0 0.0
  %306 = vmatprep.subr.mxu0 0.0
  %307 = vmatpush2.msra.mxu0 0.0
  %308 = vmatprep.subr.mxu0 0.0
  %309 = vmatpush2.msra.mxu0 0.0
  %310 = vmatprep.subr.mxu0 0.0
  %311 = vmatpush2.msra.mxu0 0.0
  %312 = vmatprep.subr.mxu0 0.0
  %313 = vmatpush2.msra.mxu0 0.0
  %314 = vmatprep.subr.mxu0 0.0
  %315 = vmatpush2.msra.mxu0 0.0
  %316 = vmatprep.subr.mxu0 0.0
  %317 = vmatpush2.msra.mxu0 0.0
  %318 = vmatprep.subr.mxu0 0.0
  %319 = vmatpush2.msra.mxu0 0.0
  %320 = vmatprep.mubr.f32.mxu0 0.0
  %321 = vmatmul.mubr.f32.gmra.mxu0 %v245
  %v322 = vpop.f32.mrf.mxu0
  %v323 = vadd.f32 0.0, %v322
  %v324 = vpop.f32.mrf.mxu0
  %325 = vmatprep.mubr.f32.mxu0 0.0
  %326 = vmatmul.mubr.f32.gmra.mxu0 %v248
  %v327 = vpop.f32.mrf.mxu0
  %v328 = vadd.f32 0.0, %v327
  %v329 = vpop.f32.mrf.mxu0
  %330 = vmatprep.mubr.f32.mxu0 0.0
  %331 = vmatmul.mubr.f32.gmra.mxu0 %v251
  %v332 = vpop.f32.mrf.mxu0
  %v333 = vadd.f32 0.0, %v332
  %v334 = vpop.f32.mrf.mxu0
  %335 = vmatprep.mubr.f32.mxu0 0.0
  %336 = vmatmul.mubr.f32.gmra.mxu0 %v254
  %v337 = vpop.f32.mrf.mxu0
  %v338 = vadd.f32 0.0, %v337
  %v339 = vpop.f32.mrf.mxu0
  %340 = vdwg.mxu0
  %vm341 = vcmask 130048
  %v343 = vsel %vm341, %v235, 0
  %v346 = vsel %vm341, %v236, 0
  %v349 = vsel %vm341, %v237, 0
  %v352 = vsel %vm341, %v238, 0
  %354 = vmatprep.subr.mxu0 0.0
  %355 = vmatpush1.msra.mxu0 0.0
  %356 = vmatprep.subr.mxu0 0.0
  %357 = vmatpush1.msra.mxu0 0.0
  %358 = vmatprep.subr.mxu0 0.0
  %359 = vmatpush1.msra.mxu0 0.0
  %360 = vmatprep.subr.mxu0 0.0
  %361 = vmatpush1.msra.mxu0 0.0
  %362 = vmatprep.subr.mxu0 0.0
  %363 = vmatpush1.msra.mxu0 0.0
  %364 = vmatprep.subr.mxu0 0.0
  %365 = vmatpush1.msra.mxu0 0.0
  %366 = vmatprep.subr.mxu0 0.0
  %367 = vmatpush1.msra.mxu0 0.0
  %368 = vmatprep.subr.mxu0 0.0
  %369 = vmatpush1.msra.mxu0 0.0
  %370 = vmatprep.subr.mxu0 0.0
  %371 = vmatpush1.msra.mxu0 0.0
  %372 = vmatprep.subr.mxu0 0.0
  %373 = vmatpush1.msra.mxu0 0.0
  %374 = vmatprep.subr.mxu0 0.0
  %375 = vmatpush1.msra.mxu0 0.0
  %376 = vmatprep.subr.mxu0 0.0
  %377 = vmatpush1.msra.mxu0 0.0
  %378 = vmatprep.subr.mxu0 0.0
  %379 = vmatpush1.msra.mxu0 0.0
  %380 = vmatprep.subr.mxu0 0.0
  %381 = vmatpush1.msra.mxu0 0.0
  %382 = vmatprep.subr.mxu0 0.0
  %383 = vmatpush1.msra.mxu0 %v29
  %384 = vmatprep.subr.mxu0 0.0
  %385 = vmatpush1.msra.mxu0 %v28
  %386 = vmatprep.subr.mxu0 0.0
  %387 = vmatpush2.msra.mxu0 0.0
  %388 = vmatprep.subr.mxu0 0.0
  %389 = vmatpush2.msra.mxu0 0.0
  %390 = vmatprep.subr.mxu0 0.0
  %391 = vmatpush2.msra.mxu0 0.0
  %392 = vmatprep.subr.mxu0 0.0
  %393 = vmatpush2.msra.mxu0 0.0
  %394 = vmatprep.subr.mxu0 0.0
  %395 = vmatpush2.msra.mxu0 0.0
  %396 = vmatprep.subr.mxu0 0.0
  %397 = vmatpush2.msra.mxu0 0.0
  %398 = vmatprep.subr.mxu0 0.0
  %399 = vmatpush2.msra.mxu0 0.0
  %400 = vmatprep.subr.mxu0 0.0
  %401 = vmatpush2.msra.mxu0 0.0
  %402 = vmatprep.subr.mxu0 0.0
  %403 = vmatpush2.msra.mxu0 0.0
  %404 = vmatprep.subr.mxu0 0.0
  %405 = vmatpush2.msra.mxu0 0.0
  %406 = vmatprep.subr.mxu0 0.0
  %407 = vmatpush2.msra.mxu0 0.0
  %408 = vmatprep.subr.mxu0 0.0
  %409 = vmatpush2.msra.mxu0 0.0
  %410 = vmatprep.subr.mxu0 0.0
  %411 = vmatpush2.msra.mxu0 0.0
  %412 = vmatprep.subr.mxu0 0.0
  %413 = vmatpush2.msra.mxu0 0.0
  %414 = vmatprep.subr.mxu0 0.0
  %415 = vmatpush2.msra.mxu0 0.0
  %416 = vmatprep.subr.mxu0 0.0
  %417 = vmatpush2.msra.mxu0 0.0
  %418 = vmatprep.mubr.f32.mxu0 0.0
  %419 = vmatmul.mubr.f32.gmra.mxu0 %v343
  %v420 = vpop.f32.mrf.mxu0
  %v421 = vadd.f32 %v323, %v420
  %v422 = vpop.f32.mrf.mxu0
  %423 = vmatprep.mubr.f32.mxu0 0.0
  %424 = vmatmul.mubr.f32.gmra.mxu0 %v346
  %v425 = vpop.f32.mrf.mxu0
  %v426 = vadd.f32 %v328, %v425
  %v427 = vpop.f32.mrf.mxu0
  %428 = vmatprep.mubr.f32.mxu0 0.0
  %429 = vmatmul.mubr.f32.gmra.mxu0 %v349
  %v430 = vpop.f32.mrf.mxu0
  %v431 = vadd.f32 %v333, %v430
  %v432 = vpop.f32.mrf.mxu0
  %433 = vmatprep.mubr.f32.mxu0 0.0
  %434 = vmatmul.mubr.f32.gmra.mxu0 %v352
  %v435 = vpop.f32.mrf.mxu0
  %v436 = vadd.f32 %v338, %v435
  %v437 = vpop.f32.mrf.mxu0
  %438 = vdwg.mxu0
  %v439 = vld [vmem:[%s6] sm:$0xff]
  %v440 = vld [vmem:[%s6 + $0x8] sm:$0xff]
  %v441 = vld [vmem:[%s6 + $0x10] sm:$0xff]
  %v442 = vld [vmem:[%s6 + $0x18] sm:$0xff]
  %444 = vset.pattern.permute.xlu0 0
  %445 = vperm.xlu0 %444, %v439
  %v446 = vpop.permute.xlu0 %445
  %449 = vset.pattern.permute.xlu0 0
  %450 = vperm.xlu0 %449, %v440
  %v451 = vpop.permute.xlu0 %450
  %454 = vset.pattern.permute.xlu0 0
  %455 = vperm.xlu0 %454, %v441
  %v456 = vpop.permute.xlu0 %455
  %459 = vset.pattern.permute.xlu0 0
  %460 = vperm.xlu0 %459, %v442
  %v461 = vpop.permute.xlu0 %460
  %v463 = vadd.f32 %v421, %v446
  %v464 = vadd.f32 %v426, %v451
  %v465 = vadd.f32 %v431, %v456
  %v466 = vadd.f32 %v436, %v461
  %v467 = vmax.f32 %v463, 0.0
  %v468 = vmax.f32 %v464, 0.0
  %v469 = vmax.f32 %v465, 0.0
  %v470 = vmax.f32 %v466, 0.0
  %471 = vst.msk [vmem:[%s7] sm:$0xff] %vm243, %v467
  %472 = vst.msk [vmem:[%s7 + $0x8] sm:$0xff] %vm243, %v468
  %473 = vst.msk [vmem:[%s7 + $0x10] sm:$0xff] %vm243, %v469
  %474 = vst.msk [vmem:[%s7 + $0x18] sm:$0xff] %vm243, %v470
  %v475 = vmul.f32 %v209, %v209
  %v476 = vmul.f32 %v214, %v214
  %v477 = vadd.f32 %v475, %v476
  %v478 = vmul.f32 %v219, %v219
  %v479 = vadd.f32 %v477, %v478
  %v480 = vrsqrt.pop %v479
  %v481 = vmul.f32 %v479, %v480
  %vm482 = vcmp.eq.f32.partialorder %v479, inf
  %v483 = vsel %vm482, %v479, %v481
  %vm484 = vcmp.eq.f32.partialorder %v479, 0.0
  %v485 = vand.u32 %v479, 2147483648
  %v486 = vsel %vm484, %v485, %v483
  %v487 = vmax.f32 %v486, 0.0001
  %v488 = vxor.u32 %v487, 2147483648
  %v489 = vmul.f32 %v488, 1.442695
  %v490 = vpow.pop %v489
  %v491 = vadd.f32 %v490, 1.0
  %v492 = vrcp.pop %v491
  %v493 = vmul.f32 1.0, %v492
  %v494 = vmul.f32 %v209, %v493
  %v495 = vmul.f32 %v214, %v493
  %v496 = vmul.f32 %v219, %v493
  %497 = vst.msk [vmem:[%s8] sm:$0xff] %vm243, %v494
  %498 = vst.msk [vmem:[%s8 + $0x8] sm:$0xff] %vm243, %v495
  %499 = vst.msk [vmem:[%s8 + $0x10] sm:$0xff] %vm243, %v496
  // Predicated region
  $region30: #{gvp_forward.1} parent=0 // pred_check
    _
  $region31: #{gvp_forward.1} parent=0 // pred_check_branch
    %501 = sbr.rel (0) target = $region33
  $region32: #{gvp_forward.1} parent=0 // pred_region
    _
  $region33: #{gvp_forward.1} parent=0 // pred_fallthru
    _
  // Predicated region
  $region34: #{gvp_forward.1} parent=0 // pred_check
    _
  $region35: #{gvp_forward.1} parent=0 // pred_check_branch
    %503 = sbr.rel (0) target = $region37
  $region36: #{gvp_forward.1} parent=0 // pred_region
    _
  $region37: #{gvp_forward.1} parent=0 // pred_fallthru
    _
  // Predicated region
  $region38: #{gvp_forward.1} parent=0 // pred_check
    _
  $region39: #{gvp_forward.1} parent=0 // pred_check_branch
    %505 = sbr.rel (0) target = $region41
  $region40: #{gvp_forward.1} parent=0 // pred_region
    _
  $region41: #{gvp_forward.1} parent=0 // pred_fallthru
    _
  // Predicated region
  $region42: #{gvp_forward.1} parent=0 // pred_check
    _
  $region43: #{gvp_forward.1} parent=0 // pred_check_branch
    %507 = sbr.rel (0) target = $region45
  $region44: #{gvp_forward.1} parent=0 // pred_region
    _
  $region45: #{gvp_forward.1} parent=0 // pred_fallthru
    _

</llo_original>
